<compile_context>
chip_gen: v7x
topology: tpu7x:2x2x1
jax: 0.10.0
libtpu: 0.0.40
codegen_flags: <defaults>
</compile_context>

<pallas_src>
import functools

import jax
import jax.numpy as jnp
from jax import lax
from jax.experimental import pallas as pl
from jax.experimental.pallas import tpu as pltpu


def _embed_bag_fc_kernel(member_ref, text_ref, emb_ref, wt_ref, bias_ref,  # inputs
                         out_ref,                                          # output
                         acc_ref):                                         # scratch (TB, D_pad)
    v = pl.program_id(1)
    tv = emb_ref.shape[0]          # vocab tile size
    n_pad = text_ref.shape[0]

    @pl.when(v == 0)
    def _():
        acc_ref[...] = jnp.zeros_like(acc_ref)

    # Build one-hot of token ids for this vocab tile: (N_pad, TV).
    ids = text_ref[...]                                                  # (N_pad, 1) int32
    col = lax.broadcasted_iota(jnp.int32, (n_pad, tv), 1) + v * tv       # (N_pad, TV)
    one_hot = (ids == col).astype(jnp.float32)                           # padded ids (-1) -> all zeros

    # Per-bag (scaled) histogram over this vocab tile, then gather+mean via MXU.
    hist = jnp.dot(member_ref[...], one_hot,
                   preferred_element_type=jnp.float32)                   # (TB, TV)
    acc_ref[...] += jnp.dot(hist, emb_ref[...],
                            preferred_element_type=jnp.float32)          # (TB, D_pad)

    @pl.when(v == pl.num_programs(1) - 1)
    def _():
        # Linear layer: (TB, D_pad) @ (D_pad, C_pad) + bias
        out_ref[...] = (
            jnp.dot(acc_ref[...], wt_ref[...], preferred_element_type=jnp.float32)
            + bias_ref[...]
        )


def _round_up(x, m):
    return (x + m - 1) // m * m


@functools.partial(jax.jit, static_argnames=("num_bags",))
def text_classification_forward(text, offsets, emb, w, bias, *, num_bags):
    """text: int32[N], offsets: int32[B], emb: f32[V,D], w: f32[C,D], bias: f32[C]."""
    N = text.shape[0]
    B = num_bags
    V, D = emb.shape
    C, _ = w.shape

    # Tile / pad sizes (lane-dense last dims, sublane-friendly second-to-last dims).
    TB = min(_round_up(B, 8), 128)       # bag tile
    B_pad = _round_up(B, TB)
    N_pad = _round_up(N, 128)
    D_pad = _round_up(D, 128)
    C_pad = _round_up(C, 128)
    TV = min(_round_up(V, 8), 512)       # vocab tile (keeps emb VMEM footprint small)
    V_pad = _round_up(V, TV)

    # Bag membership matrix with mean scaling folded in (empty bags -> all-zero row).
    off = offsets.astype(jnp.int32)
    off_ext = jnp.concatenate([off, jnp.array([N], dtype=jnp.int32)])
    starts = off_ext[:B]
    ends = off_ext[1:B + 1]
    counts = (ends - starts).astype(jnp.float32)
    inv = jnp.where(counts > 0, 1.0 / jnp.maximum(counts, 1.0), 0.0)

    n_iota = jnp.arange(N_pad, dtype=jnp.int32)
    member = ((n_iota[None, :] >= starts[:, None]) &
              (n_iota[None, :] < ends[:, None])).astype(jnp.float32)
    member = member * inv[:, None]                               # (B, N_pad)
    member = jnp.pad(member, ((0, B_pad - B), (0, 0)))           # (B_pad, N_pad)

    # Token-id column; pad with -1 so padded slots never match any vocab id.
    # TODO(synk): for very long token streams, also tile over N instead of
    # keeping the full (B_pad, N_pad) membership + (N_pad, 1) id column resident.
    text_col = jnp.pad(text.astype(jnp.int32), (0, N_pad - N),
                       constant_values=-1).reshape(N_pad, 1)

    emb_p = jnp.pad(emb.astype(jnp.float32), ((0, V_pad - V), (0, D_pad - D)))
    wt_p = jnp.pad(w.astype(jnp.float32).T, ((0, D_pad - D), (0, C_pad - C)))
    bias_p = jnp.pad(bias.astype(jnp.float32), (0, C_pad - C)).reshape(1, C_pad)

    grid = (B_pad // TB, V_pad // TV)

    grid_spec = pltpu.PrefetchScalarGridSpec(
        num_scalar_prefetch=0,
        grid=grid,
        in_specs=[
            pl.BlockSpec((TB, N_pad), lambda i, v: (i, 0)),       # membership
            pl.BlockSpec((N_pad, 1), lambda i, v: (0, 0)),        # token ids (column)
            pl.BlockSpec((TV, D_pad), lambda i, v: (v, 0)),       # embedding tile (pipelined)
            pl.BlockSpec((D_pad, C_pad), lambda i, v: (0, 0)),    # fc weight^T
            pl.BlockSpec((1, C_pad), lambda i, v: (0, 0)),        # fc bias
        ],
        out_specs=pl.BlockSpec((TB, C_pad), lambda i, v: (i, 0)),
        scratch_shapes=[pltpu.VMEM((TB, D_pad), jnp.float32)],
    )

    out_padded = pl.pallas_call(
        _embed_bag_fc_kernel,
        out_shape=jax.ShapeDtypeStruct((B_pad, C_pad), jnp.float32),
        grid_spec=grid_spec,
        compiler_params=pltpu.CompilerParams(
            dimension_semantics=("parallel", "arbitrary"),
            vmem_limit_bytes=32 * 1024 * 1024,
        ),
    )(member, text_col, emb_p, wt_p, bias_p)

    return out_padded[:B, :C]


def reference_forward(text, offsets, emb, w, bias):
    N = text.shape[0]
    B = offsets.shape[0]
    off_ext = jnp.concatenate([offsets, jnp.array([N], dtype=offsets.dtype)])
    rows = []
    for b in range(B):
        s, e = int(off_ext[b]), int(off_ext[b + 1])
        if e > s:
            rows.append(jnp.mean(emb[text[s:e]], axis=0))
        else:
            rows.append(jnp.zeros((emb.shape[1],), jnp.float32))
    embedded = jnp.stack(rows)
    return embedded @ w.T + bias


if __name__ == "__main__":
    # Small, deterministic problem setup (mirrors nn.EmbeddingBag + nn.Linear init).
    vocab_size, embed_dim, num_class = 64, 32, 8
    batch = 4          # number of bags
    total_tokens = 18  # flat token stream length

    key = jax.random.PRNGKey(0)
    k_emb, k_w, k_txt = jax.random.split(key, 3)

    init_range = 0.5
    emb = jax.random.uniform(
        k_emb, (vocab_size, embed_dim), jnp.float32, -init_range, init_range)
    w = jax.random.uniform(
        k_w, (num_class, embed_dim), jnp.float32, -init_range, init_range)
    bias = jnp.zeros((num_class,), jnp.float32)

    text = jax.random.randint(k_txt, (total_tokens,), 0, vocab_size, jnp.int32)
    offsets = jnp.array([0, 5, 9, 14], dtype=jnp.int32)  # 4 bags of lengths 5,4,5,4

    out = text_classification_forward(
        text, offsets, emb, w, bias, num_bags=batch)
    out = jax.block_until_ready(out)

    ref = reference_forward(text, offsets, emb, w, bias)
    assert out.shape == (batch, num_class)
    assert jnp.allclose(out, ref, atol=1e-4, rtol=1e-4), (out, ref)

    print("KERNEL_OK")
</pallas_src>

<mosaic_0001>
module attributes {stable_mosaic.version = 11 : i64} {
  func.func @_embed_bag_fc_kernel(%arg0: i32, %arg1: i32, %arg2: memref<8x128xf32, #tpu.memory_space<vmem>>, %arg3: memref<128x1xi32, #tpu.memory_space<vmem>>, %arg4: memref<64x128xf32, #tpu.memory_space<vmem>>, %arg5: memref<128x128xf32, #tpu.memory_space<vmem>>, %arg6: memref<1x128xf32, #tpu.memory_space<vmem>>, %arg7: memref<8x128xf32, #tpu.memory_space<vmem>>, %arg8: memref<8x128xf32, #tpu.memory_space<vmem>>) attributes {dimension_semantics = [#tpu.dimension_semantics<parallel>, #tpu.dimension_semantics<arbitrary>], iteration_bounds = array<i64: 1, 1>, scalar_prefetch = 0 : i64, scratch_operands = 1 : i64, tpu.core_type = #tpu.core_type<tc>, window_params = [{transform_indices = @transform_0, window_bounds = array<i64: 8, 128>}, {pipeline_mode = #tpu.pipeline_mode<synchronous>, transform_indices = @transform_1, window_bounds = array<i64: 128, 1>}, {transform_indices = @transform_2, window_bounds = array<i64: 64, 128>}, {pipeline_mode = #tpu.pipeline_mode<synchronous>, transform_indices = @transform_3, window_bounds = array<i64: 128, 128>}, {pipeline_mode = #tpu.pipeline_mode<synchronous>, transform_indices = @transform_4, window_bounds = array<i64: 1, 128>}, {transform_indices = @transform_5, window_bounds = array<i64: 8, 128>}]} {
    %c0_i32 = arith.constant 0 : i32
    %0 = arith.cmpi eq, %arg1, %c0_i32 : i32
    %1 = arith.extui %0 : i1 to i32
    %c0_i32_0 = arith.constant 0 : i32
    %2 = arith.cmpi ne, %1, %c0_i32_0 : i32
    scf.if %2 {
      %cst_13 = arith.constant 0.000000e+00 : f32
      %22 = vector.broadcast %cst_13 : f32 to vector<8x128xf32>
      %c0_14 = arith.constant 0 : index
      %c0_15 = arith.constant 0 : index
      %23 = vector.load %arg8[%c0_14, %c0_15] : memref<8x128xf32, #tpu.memory_space<vmem>>, vector<8x128xf32>
      tpu.vector_store %arg8[%c0_14, %c0_15], %22 {strides = array<i32>} : memref<8x128xf32, #tpu.memory_space<vmem>>, vector<8x128xf32>,
    } else {
    }
    %c0 = arith.constant 0 : index
    %c0_1 = arith.constant 0 : index
    %3 = vector.load %arg3[%c0, %c0_1] : memref<128x1xi32, #tpu.memory_space<vmem>>, vector<128x1xi32>
    %4 = tpu.iota {dimensions = array<i32: 1>} : vector<128x64xi32>
    %c64_i32 = arith.constant 64 : i32
    %5 = arith.muli %arg1, %c64_i32 : i32
    %6 = vector.broadcast %5 : i32 to vector<128x64xi32>
    %7 = arith.addi %4, %6 : vector<128x64xi32>
    %8 = vector.broadcast %3 : vector<128x1xi32> to vector<128x64xi32>
    %9 = arith.cmpi eq, %8, %7 : vector<128x64xi32>
    %10 = arith.extui %9 : vector<128x64xi1> to vector<128x64xi32>
    %11 = arith.sitofp %10 : vector<128x64xi32> to vector<128x64xf32>
    %c0_2 = arith.constant 0 : index
    %c0_3 = arith.constant 0 : index
    %12 = vector.load %arg2[%c0_2, %c0_3] : memref<8x128xf32, #tpu.memory_space<vmem>>, vector<8x128xf32>
    %cst = arith.constant dense<0.000000e+00> : vector<8x64xf32>
    %13 = tpu.matmul %12, %11, %cst {dimension_numbers = #tpu.dot_dimension_numbers<[1], [0], [0], [1], [0, 0, 1, 1], [], []>} : vector<8x128xf32>, vector<128x64xf32>, vector<8x64xf32> -> vector<8x64xf32>
    %c0_4 = arith.constant 0 : index
    %c0_5 = arith.constant 0 : index
    %14 = vector.load %arg8[%c0_4, %c0_5] : memref<8x128xf32, #tpu.memory_space<vmem>>, vector<8x128xf32>
    %c0_6 = arith.constant 0 : index
    %c0_7 = arith.constant 0 : index
    %15 = vector.load %arg4[%c0_6, %c0_7] : memref<64x128xf32, #tpu.memory_space<vmem>>, vector<64x128xf32>
    %cst_8 = arith.constant dense<0.000000e+00> : vector<8x128xf32>
    %16 = tpu.matmul %13, %15, %cst_8 {dimension_numbers = #tpu.dot_dimension_numbers<[1], [0], [0], [1], [0, 0, 1, 1], [], []>} : vector<8x64xf32>, vector<64x128xf32>, vector<8x128xf32> -> vector<8x128xf32>
    %17 = arith.addf %14, %16 : vector<8x128xf32>
    %c0_9 = arith.constant 0 : index
    %c0_10 = arith.constant 0 : index
    %18 = vector.load %arg8[%c0_9, %c0_10] : memref<8x128xf32, #tpu.memory_space<vmem>>, vector<8x128xf32>
    tpu.vector_store %arg8[%c0_9, %c0_10], %17 {strides = array<i32>} : memref<8x128xf32, #tpu.memory_space<vmem>>, vector<8x128xf32>,
    %c0_i32_11 = arith.constant 0 : i32
    %19 = arith.cmpi eq, %arg1, %c0_i32_11 : i32
    %20 = arith.extui %19 : i1 to i32
    %c0_i32_12 = arith.constant 0 : i32
    %21 = arith.cmpi ne, %20, %c0_i32_12 : i32
    scf.if %21 {
      %c0_13 = arith.constant 0 : index
      %c0_14 = arith.constant 0 : index
      %22 = vector.load %arg8[%c0_13, %c0_14] : memref<8x128xf32, #tpu.memory_space<vmem>>, vector<8x128xf32>
      %c0_15 = arith.constant 0 : index
      %c0_16 = arith.constant 0 : index
      %23 = vector.load %arg5[%c0_15, %c0_16] : memref<128x128xf32, #tpu.memory_space<vmem>>, vector<128x128xf32>
      %cst_17 = arith.constant dense<0.000000e+00> : vector<8x128xf32>
      %24 = tpu.matmul %22, %23, %cst_17 {dimension_numbers = #tpu.dot_dimension_numbers<[1], [0], [0], [1], [0, 0, 1, 1], [], []>} : vector<8x128xf32>, vector<128x128xf32>, vector<8x128xf32> -> vector<8x128xf32>
      %c0_18 = arith.constant 0 : index
      %c0_19 = arith.constant 0 : index
      %25 = vector.load %arg6[%c0_18, %c0_19] : memref<1x128xf32, #tpu.memory_space<vmem>>, vector<1x128xf32>
      %26 = vector.broadcast %25 : vector<1x128xf32> to vector<8x128xf32>
      %27 = arith.addf %24, %26 : vector<8x128xf32>
      %c0_20 = arith.constant 0 : index
      %c0_21 = arith.constant 0 : index
      %28 = vector.load %arg7[%c0_20, %c0_21] : memref<8x128xf32, #tpu.memory_space<vmem>>, vector<8x128xf32>
      tpu.vector_store %arg7[%c0_20, %c0_21], %27 {strides = array<i32>} : memref<8x128xf32, #tpu.memory_space<vmem>>, vector<8x128xf32>,
    } else {
    }
    return
  }
  func.func @transform_0(%arg0: i32, %arg1: i32) -> (i32, i32) {
    %c0_i32 = arith.constant 0 : i32
    %c0_i32_0 = arith.constant 0 : i32
    return %arg0, %c0_i32 : i32, i32
  }
  func.func @transform_1(%arg0: i32, %arg1: i32) -> (i32, i32) {
    %c0_i32 = arith.constant 0 : i32
    %c0_i32_0 = arith.constant 0 : i32
    %c0_i32_1 = arith.constant 0 : i32
    return %c0_i32, %c0_i32_0 : i32, i32
  }
  func.func @transform_2(%arg0: i32, %arg1: i32) -> (i32, i32) {
    %c0_i32 = arith.constant 0 : i32
    %c0_i32_0 = arith.constant 0 : i32
    return %arg1, %c0_i32 : i32, i32
  }
  func.func @transform_3(%arg0: i32, %arg1: i32) -> (i32, i32) {
    %c0_i32 = arith.constant 0 : i32
    %c0_i32_0 = arith.constant 0 : i32
    %c0_i32_1 = arith.constant 0 : i32
    return %c0_i32, %c0_i32_0 : i32, i32
  }
  func.func @transform_4(%arg0: i32, %arg1: i32) -> (i32, i32) {
    %c0_i32 = arith.constant 0 : i32
    %c0_i32_0 = arith.constant 0 : i32
    %c0_i32_1 = arith.constant 0 : i32
    return %c0_i32, %c0_i32_0 : i32, i32
  }
  func.func @transform_5(%arg0: i32, %arg1: i32) -> (i32, i32) {
    %c0_i32 = arith.constant 0 : i32
    %c0_i32_0 = arith.constant 0 : i32
    return %arg0, %c0_i32 : i32, i32
  }
}

</mosaic_0001>

<llo_original>
// kernel: text_classification_forward.1
$region0: #{text_classification_forward.1}
  #allocation0 [shape = 'u32[]', space=smem, size = 0x4, offset = 0x4, fixed_abs, tag = 'smem constant byte address 0x4 - core index']
  #allocation1 [shape = 'u32[144,128]{1,0:T(1,128)}', space=vmem, size = 0x12000, scoped, tag = 'internal scratch']
  #allocation2 [shape = 'f32[8,128]{1,0:T(8,128)}', space=vmem, size = 0x1000, scoped, tag = 'scratch operand']
  %s0 = inlined_call_operand.vmem [shape: f32[8,128], index: 0, kind: input, shape index: {}]
  %s1 = inlined_call_operand.vmem [shape: s32[128,1], index: 1, kind: input, shape index: {}]
  %s2 = inlined_call_operand.vmem [shape: f32[64,128], index: 2, kind: input, shape index: {}]
  %s3 = inlined_call_operand.vmem [shape: f32[128,128], index: 3, kind: input, shape index: {}]
  %s4 = inlined_call_operand.vmem [shape: f32[1,128], index: 4, kind: input, shape index: {}]
  %s5 = inlined_call_operand.vmem [shape: f32[8,128], index: 5, kind: output, shape index: {}]
  %s6 = sld [smem:[#allocation0]]
  $region38: #{text_classification_forward.1} parent=0
    _
  %s8 = ssub.s32 1, %s6
  %s9 = scalar_select 0, %s8, %s6
  // Predicated region
  $region2: #{text_classification_forward.1} parent=0 // pred_check
    _
  $region3: #{text_classification_forward.1} parent=0 // pred_check_branch
    %11 = sbr.rel (0) target = $region5
  $region4: #{text_classification_forward.1} parent=0 // pred_region
    _
  $region5: #{text_classification_forward.1} parent=0 // pred_fallthru
    _
  // Predicated region
  $region6: #{text_classification_forward.1} parent=0 // pred_check
    _
  $region7: #{text_classification_forward.1} parent=0 // pred_check_branch
    %13 = sbr.rel (0) target = $region9
  $region8: #{text_classification_forward.1} parent=0 // pred_region
    _
  $region9: #{text_classification_forward.1} parent=0 // pred_fallthru
    _
  // Predicated region
  $region10: #{text_classification_forward.1} parent=0 // pred_check
    _
  $region11: #{text_classification_forward.1} parent=0 // pred_check_branch
    %15 = sbr.rel (0) target = $region13
  $region12: #{text_classification_forward.1} parent=0 // pred_region
    _
  $region13: #{text_classification_forward.1} parent=0 // pred_fallthru
    _
  // Predicated region
  $region14: #{text_classification_forward.1} parent=0 // pred_check
    _
  $region15: #{text_classification_forward.1} parent=0 // pred_check_branch
    %17 = sbr.rel (0) target = $region17
  $region16: #{text_classification_forward.1} parent=0 // pred_region
    _
  $region17: #{text_classification_forward.1} parent=0 // pred_fallthru
    _
  // Predicated region
  $region18: #{text_classification_forward.1} parent=0 // pred_check
    _
  $region19: #{text_classification_forward.1} parent=0 // pred_check_branch
    %19 = sbr.rel (0) target = $region21
  $region20: #{text_classification_forward.1} parent=0 // pred_region
    _
  $region21: #{text_classification_forward.1} parent=0 // pred_fallthru
    _
  %p20 = scmp.eq.s32.totalorder 0, 0
  // Predicated region
  $region22: #{text_classification_forward.1} parent=0 // pred_check
    %p21 = pneg %p20
  $region23: #{text_classification_forward.1} parent=0 // pred_check_branch
    %23 = sbr.rel (%p21) target = $region25
  $region24: #{text_classification_forward.1} parent=0 // pred_region
    %24 = vst [vmem:[#allocation2] sm:$0xff] 0.0
  $region25: #{text_classification_forward.1} parent=0 // pred_fallthru
    _
  %v25 = vld [vmem:[%s1] sm:$0xff]
  %v26 = vld [vmem:[%s1 + $0x8] sm:$0xff]
  %v27 = vld [vmem:[%s1 + $0x10] sm:$0xff]
  %v28 = vld [vmem:[%s1 + $0x18] sm:$0xff]
  %v29 = vld [vmem:[%s1 + $0x20] sm:$0xff]
  %v30 = vld [vmem:[%s1 + $0x28] sm:$0xff]
  %v31 = vld [vmem:[%s1 + $0x30] sm:$0xff]
  %v32 = vld [vmem:[%s1 + $0x38] sm:$0xff]
  %v33 = vld [vmem:[%s1 + $0x40] sm:$0xff]
  %v34 = vld [vmem:[%s1 + $0x48] sm:$0xff]
  %v35 = vld [vmem:[%s1 + $0x50] sm:$0xff]
  %v36 = vld [vmem:[%s1 + $0x58] sm:$0xff]
  %v37 = vld [vmem:[%s1 + $0x60] sm:$0xff]
  %v38 = vld [vmem:[%s1 + $0x68] sm:$0xff]
  %v39 = vld [vmem:[%s1 + $0x70] sm:$0xff]
  %v40 = vld [vmem:[%s1 + $0x78] sm:$0xff]
  %v41 = vlaneseq
  %v42 = vand.u32 %v41, 127
  %s43 = smul.u32 0, 64
  %v44 = vstv %s43
  %v45 = vadd.s32 %v42, %v44
  %46 = vset.pattern.permute.xlu0 0
  %47 = vperm.xlu0 %46, %v25
  %v48 = vpop.permute.xlu0 %47
  %49 = vset.pattern.permute.xlu0 0
  %50 = vperm.xlu0 %49, %v26
  %v51 = vpop.permute.xlu0 %50
  %52 = vset.pattern.permute.xlu0 0
  %53 = vperm.xlu0 %52, %v27
  %v54 = vpop.permute.xlu0 %53
  %55 = vset.pattern.permute.xlu0 0
  %56 = vperm.xlu0 %55, %v28
  %v57 = vpop.permute.xlu0 %56
  %58 = vset.pattern.permute.xlu0 0
  %59 = vperm.xlu0 %58, %v29
  %v60 = vpop.permute.xlu0 %59
  %61 = vset.pattern.permute.xlu0 0
  %62 = vperm.xlu0 %61, %v30
  %v63 = vpop.permute.xlu0 %62
  %64 = vset.pattern.permute.xlu0 0
  %65 = vperm.xlu0 %64, %v31
  %v66 = vpop.permute.xlu0 %65
  %67 = vset.pattern.permute.xlu0 0
  %68 = vperm.xlu0 %67, %v32
  %v69 = vpop.permute.xlu0 %68
  %70 = vset.pattern.permute.xlu0 0
  %71 = vperm.xlu0 %70, %v33
  %v72 = vpop.permute.xlu0 %71
  %73 = vset.pattern.permute.xlu0 0
  %74 = vperm.xlu0 %73, %v34
  %v75 = vpop.permute.xlu0 %74
  %76 = vset.pattern.permute.xlu0 0
  %77 = vperm.xlu0 %76, %v35
  %v78 = vpop.permute.xlu0 %77
  %79 = vset.pattern.permute.xlu0 0
  %80 = vperm.xlu0 %79, %v36
  %v81 = vpop.permute.xlu0 %80
  %82 = vset.pattern.permute.xlu0 0
  %83 = vperm.xlu0 %82, %v37
  %v84 = vpop.permute.xlu0 %83
  %85 = vset.pattern.permute.xlu0 0
  %86 = vperm.xlu0 %85, %v38
  %v87 = vpop.permute.xlu0 %86
  %88 = vset.pattern.permute.xlu0 0
  %89 = vperm.xlu0 %88, %v39
  %v90 = vpop.permute.xlu0 %89
  %91 = vset.pattern.permute.xlu0 0
  %92 = vperm.xlu0 %91, %v40
  %v93 = vpop.permute.xlu0 %92
  %vm94 = vcmp.eq.s32.totalorder %v48, %v45
  %vm95 = vcmp.eq.s32.totalorder %v51, %v45
  %vm96 = vcmp.eq.s32.totalorder %v54, %v45
  %vm97 = vcmp.eq.s32.totalorder %v57, %v45
  %vm98 = vcmp.eq.s32.totalorder %v60, %v45
  %vm99 = vcmp.eq.s32.totalorder %v63, %v45
  %vm100 = vcmp.eq.s32.totalorder %v66, %v45
  %vm101 = vcmp.eq.s32.totalorder %v69, %v45
  %vm102 = vcmp.eq.s32.totalorder %v72, %v45
  %vm103 = vcmp.eq.s32.totalorder %v75, %v45
  %vm104 = vcmp.eq.s32.totalorder %v78, %v45
  %vm105 = vcmp.eq.s32.totalorder %v81, %v45
  %vm106 = vcmp.eq.s32.totalorder %v84, %v45
  %vm107 = vcmp.eq.s32.totalorder %v87, %v45
  %vm108 = vcmp.eq.s32.totalorder %v90, %v45
  %vm109 = vcmp.eq.s32.totalorder %v93, %v45
  %v110 = vsel %vm94, 1, 0
  %v111 = vsel %vm95, 1, 0
  %v112 = vsel %vm96, 1, 0
  %v113 = vsel %vm97, 1, 0
  %v114 = vsel %vm98, 1, 0
  %v115 = vsel %vm99, 1, 0
  %v116 = vsel %vm100, 1, 0
  %v117 = vsel %vm101, 1, 0
  %v118 = vsel %vm102, 1, 0
  %v119 = vsel %vm103, 1, 0
  %v120 = vsel %vm104, 1, 0
  %v121 = vsel %vm105, 1, 0
  %v122 = vsel %vm106, 1, 0
  %v123 = vsel %vm107, 1, 0
  %v124 = vsel %vm108, 1, 0
  %v125 = vsel %vm109, 1, 0
  %v126 = vcvt.s32.f32 %v110
  %v127 = vcvt.s32.f32 %v111
  %v128 = vcvt.s32.f32 %v112
  %v129 = vcvt.s32.f32 %v113
  %v130 = vcvt.s32.f32 %v114
  %v131 = vcvt.s32.f32 %v115
  %v132 = vcvt.s32.f32 %v116
  %v133 = vcvt.s32.f32 %v117
  %v134 = vcvt.s32.f32 %v118
  %v135 = vcvt.s32.f32 %v119
  %v136 = vcvt.s32.f32 %v120
  %v137 = vcvt.s32.f32 %v121
  %v138 = vcvt.s32.f32 %v122
  %v139 = vcvt.s32.f32 %v123
  %v140 = vcvt.s32.f32 %v124
  %v141 = vcvt.s32.f32 %v125
  %v142 = vld [vmem:[%s0] sm:$0xff]
  %143 = vmatprep.subr.mxu0 0.0
  %144 = vmatpush1.msra.mxu0 %v126
  %145 = vmatprep.subr.mxu0 0.0
  %146 = vmatpush1.msra.mxu0 %v127
  %147 = vmatprep.subr.mxu0 0.0
  %148 = vmatpush1.msra.mxu0 %v128
  %149 = vmatprep.subr.mxu0 0.0
  %150 = vmatpush1.msra.mxu0 %v129
  %151 = vmatprep.subr.mxu0 0.0
  %152 = vmatpush1.msra.mxu0 %v130
  %153 = vmatprep.subr.mxu0 0.0
  %154 = vmatpush1.msra.mxu0 %v131
  %155 = vmatprep.subr.mxu0 0.0
  %156 = vmatpush1.msra.mxu0 %v132
  %157 = vmatprep.subr.mxu0 0.0
  %158 = vmatpush1.msra.mxu0 %v133
  %159 = vmatprep.subr.mxu0 0.0
  %160 = vmatpush1.msra.mxu0 %v134
  %161 = vmatprep.subr.mxu0 0.0
  %162 = vmatpush1.msra.mxu0 %v135
  %163 = vmatprep.subr.mxu0 0.0
  %164 = vmatpush1.msra.mxu0 %v136
  %165 = vmatprep.subr.mxu0 0.0
  %166 = vmatpush1.msra.mxu0 %v137
  %167 = vmatprep.subr.mxu0 0.0
  %168 = vmatpush1.msra.mxu0 %v138
  %169 = vmatprep.subr.mxu0 0.0
  %170 = vmatpush1.msra.mxu0 %v139
  %171 = vmatprep.subr.mxu0 0.0
  %172 = vmatpush1.msra.mxu0 %v140
  %173 = vmatprep.subr.mxu0 0.0
  %174 = vmatpush1.msra.mxu0 %v141
  %175 = vmatprep.subr.mxu0 0.0
  %176 = vmatpush1.msra.mxu0 0.0
  %177 = vmatprep.subr.mxu0 0.0
  %178 = vmatpush1.msra.mxu0 0.0
  %179 = vmatprep.subr.mxu0 0.0
  %180 = vmatpush1.msra.mxu0 0.0
  %181 = vmatprep.subr.mxu0 0.0
  %182 = vmatpush1.msra.mxu0 0.0
  %183 = vmatprep.subr.mxu0 0.0
  %184 = vmatpush1.msra.mxu0 0.0
  %185 = vmatprep.subr.mxu0 0.0
  %186 = vmatpush1.msra.mxu0 0.0
  %187 = vmatprep.subr.mxu0 0.0
  %188 = vmatpush1.msra.mxu0 0.0
  %189 = vmatprep.subr.mxu0 0.0
  %190 = vmatpush1.msra.mxu0 0.0
  %191 = vmatprep.subr.mxu0 0.0
  %192 = vmatpush1.msra.mxu0 0.0
  %193 = vmatprep.subr.mxu0 0.0
  %194 = vmatpush1.msra.mxu0 0.0
  %195 = vmatprep.subr.mxu0 0.0
  %196 = vmatpush1.msra.mxu0 0.0
  %197 = vmatprep.subr.mxu0 0.0
  %198 = vmatpush1.msra.mxu0 0.0
  %199 = vmatprep.subr.mxu0 0.0
  %200 = vmatpush1.msra.mxu0 0.0
  %201 = vmatprep.subr.mxu0 0.0
  %202 = vmatpush1.msra.mxu0 0.0
  %203 = vmatprep.subr.mxu0 0.0
  %204 = vmatpush1.msra.mxu0 0.0
  %205 = vmatprep.subr.mxu0 0.0
  %206 = vmatpush1.msra.mxu0 0.0
  %207 = vmatprep.mubr.f32.mxu0 0.0
  %208 = vmatmul.mubr.f32.gmra.mrb[0].mxu0 %v142
  %v209 = vpop.f32.mrb[0].mxu0
  %v210 = vadd.f32 0.0, %v209
  %v211 = vpop.f32.mrb[0].mxu0
  %212 = vdwg.mxu0
  %v213 = vld [vmem:[#allocation2] sm:$0xff]
  %v214 = vld [vmem:[%s2] sm:$0xff]
  %v215 = vld [vmem:[%s2 + $0x8] sm:$0xff]
  %v216 = vld [vmem:[%s2 + $0x10] sm:$0xff]
  %v217 = vld [vmem:[%s2 + $0x18] sm:$0xff]
  %v218 = vld [vmem:[%s2 + $0x20] sm:$0xff]
  %v219 = vld [vmem:[%s2 + $0x28] sm:$0xff]
  %v220 = vld [vmem:[%s2 + $0x30] sm:$0xff]
  %v221 = vld [vmem:[%s2 + $0x38] sm:$0xff]
  %vm222 = vcmask 523264
  %v224 = vsel %vm222, %v210, 0
  %226 = vmatprep.subr.mxu0 0.0
  %227 = vmatpush1.msra.mxu0 %v214
  %228 = vmatprep.subr.mxu0 0.0
  %229 = vmatpush1.msra.mxu0 %v215
  %230 = vmatprep.subr.mxu0 0.0
  %231 = vmatpush1.msra.mxu0 %v216
  %232 = vmatprep.subr.mxu0 0.0
  %233 = vmatpush1.msra.mxu0 %v217
  %234 = vmatprep.subr.mxu0 0.0
  %235 = vmatpush1.msra.mxu0 %v218
  %236 = vmatprep.subr.mxu0 0.0
  %237 = vmatpush1.msra.mxu0 %v219
  %238 = vmatprep.subr.mxu0 0.0
  %239 = vmatpush1.msra.mxu0 %v220
  %240 = vmatprep.subr.mxu0 0.0
  %241 = vmatpush1.msra.mxu0 %v221
  %242 = vmatprep.subr.mxu0 0.0
  %243 = vmatpush1.msra.mxu0 0.0
  %244 = vmatprep.subr.mxu0 0.0
  %245 = vmatpush1.msra.mxu0 0.0
  %246 = vmatprep.subr.mxu0 0.0
  %247 = vmatpush1.msra.mxu0 0.0
  %248 = vmatprep.subr.mxu0 0.0
  %249 = vmatpush1.msra.mxu0 0.0
  %250 = vmatprep.subr.mxu0 0.0
  %251 = vmatpush1.msra.mxu0 0.0
  %252 = vmatprep.subr.mxu0 0.0
  %253 = vmatpush1.msra.mxu0 0.0
  %254 = vmatprep.subr.mxu0 0.0
  %255 = vmatpush1.msra.mxu0 0.0
  %256 = vmatprep.subr.mxu0 0.0
  %257 = vmatpush1.msra.mxu0 0.0
  %258 = vmatprep.subr.mxu0 0.0
  %259 = vmatpush1.msra.mxu0 0.0
  %260 = vmatprep.subr.mxu0 0.0
  %261 = vmatpush1.msra.mxu0 0.0
  %262 = vmatprep.subr.mxu0 0.0
  %263 = vmatpush1.msra.mxu0 0.0
  %264 = vmatprep.subr.mxu0 0.0
  %265 = vmatpush1.msra.mxu0 0.0
  %266 = vmatprep.subr.mxu0 0.0
  %267 = vmatpush1.msra.mxu0 0.0
  %268 = vmatprep.subr.mxu0 0.0
  %269 = vmatpush1.msra.mxu0 0.0
  %270 = vmatprep.subr.mxu0 0.0
  %271 = vmatpush1.msra.mxu0 0.0
  %272 = vmatprep.subr.mxu0 0.0
  %273 = vmatpush1.msra.mxu0 0.0
  %274 = vmatprep.subr.mxu0 0.0
  %275 = vmatpush1.msra.mxu0 0.0
  %276 = vmatprep.subr.mxu0 0.0
  %277 = vmatpush1.msra.mxu0 0.0
  %278 = vmatprep.subr.mxu0 0.0
  %279 = vmatpush1.msra.mxu0 0.0
  %280 = vmatprep.subr.mxu0 0.0
  %281 = vmatpush1.msra.mxu0 0.0
  %282 = vmatprep.subr.mxu0 0.0
  %283 = vmatpush1.msra.mxu0 0.0
  %284 = vmatprep.subr.mxu0 0.0
  %285 = vmatpush1.msra.mxu0 0.0
  %286 = vmatprep.subr.mxu0 0.0
  %287 = vmatpush1.msra.mxu0 0.0
  %288 = vmatprep.subr.mxu0 0.0
  %289 = vmatpush1.msra.mxu0 0.0
  %290 = vmatprep.mubr.f32.mxu0 0.0
  %291 = vmatmul.mubr.f32.gmra.mrb[0].mxu0 %v224
  %v292 = vpop.f32.mrb[0].mxu0
  %v293 = vadd.f32 0.0, %v292
  %v294 = vpop.f32.mrb[0].mxu0
  %295 = vdwg.mxu0
  %v296 = vadd.f32 %v213, %v293
  %297 = vst [vmem:[#allocation2] sm:$0xff] %v296
  // Predicated region
  $region26: #{text_classification_forward.1} parent=0 // pred_check
    %p298 = pneg %p20
  $region27: #{text_classification_forward.1} parent=0 // pred_check_branch
    %300 = sbr.rel (%p298) target = $region29
  $region28: #{text_classification_forward.1} parent=0 // pred_region
    %v301 = vld [vmem:[#allocation2] sm:$0xff]
    %v302 = vld [vmem:[%s3] sm:$0xff]
    %v303 = vld [vmem:[%s3 + $0x8] sm:$0xff]
    %v304 = vld [vmem:[%s3 + $0x10] sm:$0xff]
    %v305 = vld [vmem:[%s3 + $0x18] sm:$0xff]
    %v306 = vld [vmem:[%s3 + $0x20] sm:$0xff]
    %v307 = vld [vmem:[%s3 + $0x28] sm:$0xff]
    %v308 = vld [vmem:[%s3 + $0x30] sm:$0xff]
    %v309 = vld [vmem:[%s3 + $0x38] sm:$0xff]
    %v310 = vld [vmem:[%s3 + $0x40] sm:$0xff]
    %v311 = vld [vmem:[%s3 + $0x48] sm:$0xff]
    %v312 = vld [vmem:[%s3 + $0x50] sm:$0xff]
    %v313 = vld [vmem:[%s3 + $0x58] sm:$0xff]
    %v314 = vld [vmem:[%s3 + $0x60] sm:$0xff]
    %v315 = vld [vmem:[%s3 + $0x68] sm:$0xff]
    %v316 = vld [vmem:[%s3 + $0x70] sm:$0xff]
    %v317 = vld [vmem:[%s3 + $0x78] sm:$0xff]
    %v318 = vld [vmem:[%s4] sm:$0x1]
    %v320 = vlaneseq
    %v321 = vshrl.u32 %v320, 7
    %v322 = vsub.s32 0, %v321
    %v323 = vrot.slane %v318, %v322
    %325 = vmatprep.subr.mxu0 0.0
    %326 = vmatpush1.msra.mxu0 %v302
    %327 = vmatprep.subr.mxu0 0.0
    %328 = vmatpush1.msra.mxu0 %v303
    %329 = vmatprep.subr.mxu0 0.0
    %330 = vmatpush1.msra.mxu0 %v304
    %331 = vmatprep.subr.mxu0 0.0
    %332 = vmatpush1.msra.mxu0 %v305
    %333 = vmatprep.subr.mxu0 0.0
    %334 = vmatpush1.msra.mxu0 %v306
    %335 = vmatprep.subr.mxu0 0.0
    %336 = vmatpush1.msra.mxu0 %v307
    %337 = vmatprep.subr.mxu0 0.0
    %338 = vmatpush1.msra.mxu0 %v308
    %339 = vmatprep.subr.mxu0 0.0
    %340 = vmatpush1.msra.mxu0 %v309
    %341 = vmatprep.subr.mxu0 0.0
    %342 = vmatpush1.msra.mxu0 %v310
    %343 = vmatprep.subr.mxu0 0.0
    %344 = vmatpush1.msra.mxu0 %v311
    %345 = vmatprep.subr.mxu0 0.0
    %346 = vmatpush1.msra.mxu0 %v312
    %347 = vmatprep.subr.mxu0 0.0
    %348 = vmatpush1.msra.mxu0 %v313
    %349 = vmatprep.subr.mxu0 0.0
    %350 = vmatpush1.msra.mxu0 %v314
    %351 = vmatprep.subr.mxu0 0.0
    %352 = vmatpush1.msra.mxu0 %v315
    %353 = vmatprep.subr.mxu0 0.0
    %354 = vmatpush1.msra.mxu0 %v316
    %355 = vmatprep.subr.mxu0 0.0
    %356 = vmatpush1.msra.mxu0 %v317
    %357 = vmatprep.subr.mxu0 0.0
    %358 = vmatpush1.msra.mxu0 0.0
    %359 = vmatprep.subr.mxu0 0.0
    %360 = vmatpush1.msra.mxu0 0.0
    %361 = vmatprep.subr.mxu0 0.0
    %362 = vmatpush1.msra.mxu0 0.0
    %363 = vmatprep.subr.mxu0 0.0
    %364 = vmatpush1.msra.mxu0 0.0
    %365 = vmatprep.subr.mxu0 0.0
    %366 = vmatpush1.msra.mxu0 0.0
    %367 = vmatprep.subr.mxu0 0.0
    %368 = vmatpush1.msra.mxu0 0.0
    %369 = vmatprep.subr.mxu0 0.0
    %370 = vmatpush1.msra.mxu0 0.0
    %371 = vmatprep.subr.mxu0 0.0
    %372 = vmatpush1.msra.mxu0 0.0
    %373 = vmatprep.subr.mxu0 0.0
    %374 = vmatpush1.msra.mxu0 0.0
    %375 = vmatprep.subr.mxu0 0.0
    %376 = vmatpush1.msra.mxu0 0.0
    %377 = vmatprep.subr.mxu0 0.0
    %378 = vmatpush1.msra.mxu0 0.0
    %379 = vmatprep.subr.mxu0 0.0
    %380 = vmatpush1.msra.mxu0 0.0
    %381 = vmatprep.subr.mxu0 0.0
    %382 = vmatpush1.msra.mxu0 0.0
    %383 = vmatprep.subr.mxu0 0.0
    %384 = vmatpush1.msra.mxu0 0.0
    %385 = vmatprep.subr.mxu0 0.0
    %386 = vmatpush1.msra.mxu0 0.0
    %387 = vmatprep.subr.mxu0 0.0
    %388 = vmatpush1.msra.mxu0 0.0
    %389 = vmatprep.mubr.f32.mxu0 0.0
    %390 = vmatmul.mubr.f32.gmra.mrb[0].mxu0 %v301
    %v391 = vpop.f32.mrb[0].mxu0
    %v392 = vadd.f32 %v323, %v391
    %v393 = vpop.f32.mrb[0].mxu0
    %394 = vdwg.mxu0
    %395 = vst [vmem:[%s5] sm:$0xff] %v392
  $region29: #{text_classification_forward.1} parent=0 // pred_fallthru
    _
  // Predicated region
  $region30: #{text_classification_forward.1} parent=0 // pred_check
    _
  $region31: #{text_classification_forward.1} parent=0 // pred_check_branch
    %397 = sbr.rel (0) target = $region33
  $region32: #{text_classification_forward.1} parent=0 // pred_region
    _
  $region33: #{text_classification_forward.1} parent=0 // pred_fallthru
    _
  // Predicated region
  $region34: #{text_classification_forward.1} parent=0 // pred_check
    _
  $region35: #{text_classification_forward.1} parent=0 // pred_check_branch
    %399 = sbr.rel (0) target = $region37
  $region36: #{text_classification_forward.1} parent=0 // pred_region
    _
  $region37: #{text_classification_forward.1} parent=0 // pred_fallthru
    _

</llo_original>
